<compile_context>
chip_gen: v6e
topology: v6e:2x2x1
jax: 0.10.0
libtpu: 0.0.40
codegen_flags: <defaults>
</compile_context>

<pallas_src>
import jax
import jax.numpy as jnp
from jax.experimental import pallas as pl
from jax.experimental.pallas import tpu as pltpu

D_IN = 784
H1_RAW, H2_RAW, H3_RAW, N_OUT = 156, 92, 80, 10
# Lane-multiple padded hidden widths.
H1, H2, H3 = 256, 128, 128


def mlp_kernel(x_ref, w1_ref, b1_ref, w2_ref, b2_ref, w3_ref, b3_ref,
               w4_ref, b4_ref, o_ref):
    # x arrives f32 straight from HBM; cast to bf16 on the VPU (hidden under
    # the x-tile DMA) so the MXU runs native bf16 with f32 accumulation.
    x = x_ref[...].astype(jnp.bfloat16)

    h1 = jnp.dot(x, w1_ref[...], preferred_element_type=jnp.float32) + b1_ref[...]
    h1 = jnp.maximum(h1, 0.0).astype(jnp.bfloat16)

    h2 = jnp.dot(h1, w2_ref[...], preferred_element_type=jnp.float32) + b2_ref[...]
    h2 = jnp.maximum(h2, 0.0).astype(jnp.bfloat16)

    h3 = jnp.dot(h2, w3_ref[...], preferred_element_type=jnp.float32) + b3_ref[...]
    h3 = jnp.maximum(h3, 0.0).astype(jnp.bfloat16)

    logits = jnp.dot(h3, w4_ref[...], preferred_element_type=jnp.float32) + b4_ref[...]

    # Numerically stable log_softmax along the last (lane) axis, in f32.
    m = jnp.max(logits, axis=-1, keepdims=True)
    shifted = logits - m
    lse = jnp.log(jnp.sum(jnp.exp(shifted), axis=-1, keepdims=True))
    o_ref[...] = (shifted - lse).astype(o_ref.dtype)


def _round_up(n, m):
    return (n + m - 1) // m * m


def _pad2(a, rows, cols):
    r, c = a.shape
    return jnp.pad(a, ((0, rows - r), (0, cols - c)))


def prepare_params(params):
    """One-time prep: zero-pad hidden dims, cast weights to bf16, keep biases f32.

    Call once and reuse the result across forward calls (keeps the padded bf16
    weights resident and removes ~9 small XLA ops from the per-call path)."""
    return dict(
        w1=_pad2(params["w1"], D_IN, H1).astype(jnp.bfloat16),
        w2=_pad2(params["w2"], H1, H2).astype(jnp.bfloat16),
        w3=_pad2(params["w3"], H2, H3).astype(jnp.bfloat16),
        w4=_pad2(params["w4"], H3, N_OUT).astype(jnp.bfloat16),
        b1=_pad2(params["b1"], 1, H1),   # f32: added to the f32 accumulators
        b2=_pad2(params["b2"], 1, H2),
        b3=_pad2(params["b3"], 1, H3),
        b4=_pad2(params["b4"], 1, N_OUT),
    )


def _pick_tb(B, tb_max):
    """Batch tile size: multiple of 16 rows, capped at ceil(B/2) so a batch
    that spans several tiles always produces >=2 grid steps (v7x megacore).
    A batch that fits one tile uses a single full-batch block (always legal)."""
    half = _round_up(pl.cdiv(B, 2), 16)
    tb = max(16, min(tb_max, half))
    if tb >= B:
        return B
    return tb


def classifier_forward(x, prepped, tb=2048):
    """x: (B, 784) float32.  prepped: output of prepare_params()."""
    B = x.shape[0]
    tb = _pick_tb(B, tb)
    grid = (pl.cdiv(B, tb),)   # partial last block; no batch padding / copy

    x_spec = pl.BlockSpec((tb, D_IN), lambda i: (i, 0))
    out_spec = pl.BlockSpec((tb, N_OUT), lambda i: (i, 0))

    def resident(shape):
        # Full-shape block with a constant index_map: loaded once, stays in VMEM.
        return pl.BlockSpec(shape, lambda i: (0, 0))

    flops = 2 * B * (D_IN * H1 + H1 * H2 + H2 * H3 + H3 * N_OUT)
    weight_bytes = (2 * (D_IN * H1 + H1 * H2 + H2 * H3 + H3 * N_OUT)
                    + 4 * (H1 + H2 + H3 + N_OUT))
    cost = pl.CostEstimate(
        flops=flops,
        transcendentals=B * (N_OUT + 1),               # exps + per-row log
        bytes_accessed=B * (D_IN * 4 + N_OUT * 4) + weight_bytes,  # f32 x in
    )

    return pl.pallas_call(
        mlp_kernel,
        out_shape=jax.ShapeDtypeStruct((B, N_OUT), jnp.float32),
        grid=grid,
        in_specs=[
            x_spec,
            resident((D_IN, H1)), resident((1, H1)),
            resident((H1, H2)), resident((1, H2)),
            resident((H2, H3)), resident((1, H3)),
            resident((H3, N_OUT)), resident((1, N_OUT)),
        ],
        out_specs=out_spec,
        compiler_params=pltpu.CompilerParams(
            dimension_semantics=("parallel",),
            vmem_limit_bytes=48 * 1024 * 1024,
        ),
        cost_estimate=cost,
    )(x, prepped["w1"], prepped["b1"], prepped["w2"], prepped["b2"],
      prepped["w3"], prepped["b3"], prepped["w4"], prepped["b4"])


def _init_linear(key, fan_in, fan_out):
    # PyTorch nn.Linear default init: U(-1/sqrt(fan_in), 1/sqrt(fan_in))
    kw, kb = jax.random.split(key)
    bound = 1.0 / jnp.sqrt(fan_in)
    w = jax.random.uniform(kw, (fan_in, fan_out), jnp.float32, -bound, bound)
    b = jax.random.uniform(kb, (1, fan_out), jnp.float32, -bound, bound)
    return w, b


def init_params(key):
    k1, k2, k3, k4 = jax.random.split(key, 4)
    w1, b1 = _init_linear(k1, D_IN, H1_RAW)
    w2, b2 = _init_linear(k2, H1_RAW, H2_RAW)
    w3, b3 = _init_linear(k3, H2_RAW, H3_RAW)
    w4, b4 = _init_linear(k4, H3_RAW, N_OUT)
    return dict(w1=w1, b1=b1, w2=w2, b2=b2, w3=w3, b3=b3, w4=w4, b4=b4)


def reference_forward(x, p):
    # Pure-f32 reference with the original (unpadded) PyTorch semantics.
    h = jnp.maximum(x @ p["w1"] + p["b1"], 0.0)
    h = jnp.maximum(h @ p["w2"] + p["b2"], 0.0)
    h = jnp.maximum(h @ p["w3"] + p["b3"], 0.0)
    logits = h @ p["w4"] + p["b4"]
    return jax.nn.log_softmax(logits, axis=-1)


if __name__ == "__main__":
    key = jax.random.PRNGKey(0)
    kx, kx2, kp = jax.random.split(key, 3)
    params = init_params(kp)
    prepped = jax.tree_util.tree_map(jax.block_until_ready, prepare_params(params))

    # Check 1: small batch (B=8) -> single full-batch block.
    B = 8
    x = jax.random.normal(kx, (B, D_IN), dtype=jnp.float32)
    out = jax.block_until_ready(classifier_forward(x, prepped))
    ref = reference_forward(x, params)
    assert out.shape == (B, N_OUT)
    assert jnp.allclose(out, ref, atol=5e-2, rtol=5e-2), "mismatch (B=8)"

    # Check 2: batch not a multiple of the tile -> multi-step grid with a
    # partial last block (no batch padding path).
    B2 = 200
    x2 = jax.random.normal(kx2, (B2, D_IN), dtype=jnp.float32)
    out2 = jax.block_until_ready(classifier_forward(x2, prepped, tb=64))
    ref2 = reference_forward(x2, params)
    assert out2.shape == (B2, N_OUT)
    assert jnp.allclose(out2, ref2, atol=5e-2, rtol=5e-2), "mismatch (B=200, tb=64)"

    # Check 3: default tb -> tile capped at ceil(B/2) (exercises the 2-step /
    # megacore path with a partial last block).
    out3 = jax.block_until_ready(classifier_forward(x2, prepped))
    assert out3.shape == (B2, N_OUT)
    assert jnp.allclose(out3, ref2, atol=5e-2, rtol=5e-2), "mismatch (B=200, default tb)"

    print("KERNEL_OK")
</pallas_src>

<mosaic_0001>
module attributes {stable_mosaic.version = 11 : i64} {
  func.func @mlp_kernel(%arg0: i32, %arg1: memref<8x784xf32, #tpu.memory_space<vmem>>, %arg2: memref<784x256xbf16, #tpu.memory_space<vmem>>, %arg3: memref<1x256xf32, #tpu.memory_space<vmem>>, %arg4: memref<256x128xbf16, #tpu.memory_space<vmem>>, %arg5: memref<1x128xf32, #tpu.memory_space<vmem>>, %arg6: memref<128x128xbf16, #tpu.memory_space<vmem>>, %arg7: memref<1x128xf32, #tpu.memory_space<vmem>>, %arg8: memref<128x10xbf16, #tpu.memory_space<vmem>>, %arg9: memref<1x10xf32, #tpu.memory_space<vmem>>, %arg10: memref<8x10xf32, #tpu.memory_space<vmem>>) attributes {dimension_semantics = [#tpu.dimension_semantics<parallel>], iteration_bounds = array<i64: 1>, scalar_prefetch = 0 : i64, scratch_operands = 0 : i64, tpu.core_type = #tpu.core_type<tc>, window_params = [{transform_indices = @transform_0, window_bounds = array<i64: 8, 784>}, {pipeline_mode = #tpu.pipeline_mode<synchronous>, transform_indices = @transform_1, window_bounds = array<i64: 784, 256>}, {pipeline_mode = #tpu.pipeline_mode<synchronous>, transform_indices = @transform_2, window_bounds = array<i64: 1, 256>}, {pipeline_mode = #tpu.pipeline_mode<synchronous>, transform_indices = @transform_3, window_bounds = array<i64: 256, 128>}, {pipeline_mode = #tpu.pipeline_mode<synchronous>, transform_indices = @transform_4, window_bounds = array<i64: 1, 128>}, {pipeline_mode = #tpu.pipeline_mode<synchronous>, transform_indices = @transform_5, window_bounds = array<i64: 128, 128>}, {pipeline_mode = #tpu.pipeline_mode<synchronous>, transform_indices = @transform_6, window_bounds = array<i64: 1, 128>}, {pipeline_mode = #tpu.pipeline_mode<synchronous>, transform_indices = @transform_7, window_bounds = array<i64: 128, 10>}, {pipeline_mode = #tpu.pipeline_mode<synchronous>, transform_indices = @transform_8, window_bounds = array<i64: 1, 10>}, {transform_indices = @transform_9, window_bounds = array<i64: 8, 10>}]} {
    %c0 = arith.constant 0 : index
    %c0_0 = arith.constant 0 : index
    %0 = vector.load %arg1[%c0, %c0_0] : memref<8x784xf32, #tpu.memory_space<vmem>>, vector<8x784xf32>
    %1 = arith.truncf %0 : vector<8x784xf32> to vector<8x784xbf16>
    %c0_1 = arith.constant 0 : index
    %c0_2 = arith.constant 0 : index
    %2 = vector.load %arg2[%c0_1, %c0_2] : memref<784x256xbf16, #tpu.memory_space<vmem>>, vector<784x256xbf16>
    %cst = arith.constant dense<0.000000e+00> : vector<8x256xf32>
    %3 = tpu.matmul %1, %2, %cst {dimension_numbers = #tpu.dot_dimension_numbers<[1], [0], [0], [1], [0, 0, 1, 1], [], []>} : vector<8x784xbf16>, vector<784x256xbf16>, vector<8x256xf32> -> vector<8x256xf32>
    %c0_3 = arith.constant 0 : index
    %c0_4 = arith.constant 0 : index
    %4 = vector.load %arg3[%c0_3, %c0_4] : memref<1x256xf32, #tpu.memory_space<vmem>>, vector<1x256xf32>
    %5 = vector.broadcast %4 : vector<1x256xf32> to vector<8x256xf32>
    %6 = arith.addf %3, %5 : vector<8x256xf32>
    %cst_5 = arith.constant 0.000000e+00 : f32
    %7 = vector.broadcast %cst_5 : f32 to vector<8x256xf32>
    %8 = arith.maximumf %6, %7 : vector<8x256xf32>
    %9 = arith.truncf %8 : vector<8x256xf32> to vector<8x256xbf16>
    %c0_6 = arith.constant 0 : index
    %c0_7 = arith.constant 0 : index
    %10 = vector.load %arg4[%c0_6, %c0_7] : memref<256x128xbf16, #tpu.memory_space<vmem>>, vector<256x128xbf16>
    %cst_8 = arith.constant dense<0.000000e+00> : vector<8x128xf32>
    %11 = tpu.matmul %9, %10, %cst_8 {dimension_numbers = #tpu.dot_dimension_numbers<[1], [0], [0], [1], [0, 0, 1, 1], [], []>} : vector<8x256xbf16>, vector<256x128xbf16>, vector<8x128xf32> -> vector<8x128xf32>
    %c0_9 = arith.constant 0 : index
    %c0_10 = arith.constant 0 : index
    %12 = vector.load %arg5[%c0_9, %c0_10] : memref<1x128xf32, #tpu.memory_space<vmem>>, vector<1x128xf32>
    %13 = vector.broadcast %12 : vector<1x128xf32> to vector<8x128xf32>
    %14 = arith.addf %11, %13 : vector<8x128xf32>
    %cst_11 = arith.constant 0.000000e+00 : f32
    %15 = vector.broadcast %cst_11 : f32 to vector<8x128xf32>
    %16 = arith.maximumf %14, %15 : vector<8x128xf32>
    %17 = arith.truncf %16 : vector<8x128xf32> to vector<8x128xbf16>
    %c0_12 = arith.constant 0 : index
    %c0_13 = arith.constant 0 : index
    %18 = vector.load %arg6[%c0_12, %c0_13] : memref<128x128xbf16, #tpu.memory_space<vmem>>, vector<128x128xbf16>
    %cst_14 = arith.constant dense<0.000000e+00> : vector<8x128xf32>
    %19 = tpu.matmul %17, %18, %cst_14 {dimension_numbers = #tpu.dot_dimension_numbers<[1], [0], [0], [1], [0, 0, 1, 1], [], []>} : vector<8x128xbf16>, vector<128x128xbf16>, vector<8x128xf32> -> vector<8x128xf32>
    %c0_15 = arith.constant 0 : index
    %c0_16 = arith.constant 0 : index
    %20 = vector.load %arg7[%c0_15, %c0_16] : memref<1x128xf32, #tpu.memory_space<vmem>>, vector<1x128xf32>
    %21 = vector.broadcast %20 : vector<1x128xf32> to vector<8x128xf32>
    %22 = arith.addf %19, %21 : vector<8x128xf32>
    %cst_17 = arith.constant 0.000000e+00 : f32
    %23 = vector.broadcast %cst_17 : f32 to vector<8x128xf32>
    %24 = arith.maximumf %22, %23 : vector<8x128xf32>
    %25 = arith.truncf %24 : vector<8x128xf32> to vector<8x128xbf16>
    %c0_18 = arith.constant 0 : index
    %c0_19 = arith.constant 0 : index
    %26 = vector.load %arg8[%c0_18, %c0_19] : memref<128x10xbf16, #tpu.memory_space<vmem>>, vector<128x10xbf16>
    %cst_20 = arith.constant dense<0.000000e+00> : vector<8x10xf32>
    %27 = tpu.matmul %25, %26, %cst_20 {dimension_numbers = #tpu.dot_dimension_numbers<[1], [0], [0], [1], [0, 0, 1, 1], [], []>} : vector<8x128xbf16>, vector<128x10xbf16>, vector<8x10xf32> -> vector<8x10xf32>
    %c0_21 = arith.constant 0 : index
    %c0_22 = arith.constant 0 : index
    %28 = vector.load %arg9[%c0_21, %c0_22] : memref<1x10xf32, #tpu.memory_space<vmem>>, vector<1x10xf32>
    %29 = vector.broadcast %28 : vector<1x10xf32> to vector<8x10xf32>
    %30 = arith.addf %27, %29 : vector<8x10xf32>
    %cst_23 = arith.constant dense<0xFF800000> : vector<8xf32>
    %31 = vector.multi_reduction <maximumf>, %30, %cst_23 [1] : vector<8x10xf32> to vector<8xf32>
    %32 = vector.shape_cast %31 : vector<8xf32> to vector<8x1xf32>
    %33 = vector.broadcast %32 : vector<8x1xf32> to vector<8x10xf32>
    %34 = arith.subf %30, %33 : vector<8x10xf32>
    %35 = math.exp %34 : vector<8x10xf32>
    %cst_24 = arith.constant dense<0.000000e+00> : vector<8xf32>
    %36 = vector.multi_reduction <add>, %35, %cst_24 [1] : vector<8x10xf32> to vector<8xf32>
    %37 = vector.shape_cast %36 : vector<8xf32> to vector<8x1xf32>
    %38 = math.log %37 : vector<8x1xf32>
    %39 = vector.broadcast %38 : vector<8x1xf32> to vector<8x10xf32>
    %40 = arith.subf %34, %39 : vector<8x10xf32>
    %c0_25 = arith.constant 0 : index
    %c0_26 = arith.constant 0 : index
    %41 = vector.load %arg10[%c0_25, %c0_26] : memref<8x10xf32, #tpu.memory_space<vmem>>, vector<8x10xf32>
    tpu.vector_store %arg10[%c0_25, %c0_26], %40 {strides = array<i32>} : memref<8x10xf32, #tpu.memory_space<vmem>>, vector<8x10xf32>,
    return
  }
  func.func @transform_0(%arg0: i32) -> (i32, i32) {
    %c0_i32 = arith.constant 0 : i32
    %c0_i32_0 = arith.constant 0 : i32
    return %arg0, %c0_i32 : i32, i32
  }
  func.func @transform_1(%arg0: i32) -> (i32, i32) {
    %c0_i32 = arith.constant 0 : i32
    %c0_i32_0 = arith.constant 0 : i32
    %c0_i32_1 = arith.constant 0 : i32
    return %c0_i32, %c0_i32_0 : i32, i32
  }
  func.func @transform_2(%arg0: i32) -> (i32, i32) {
    %c0_i32 = arith.constant 0 : i32
    %c0_i32_0 = arith.constant 0 : i32
    %c0_i32_1 = arith.constant 0 : i32
    return %c0_i32, %c0_i32_0 : i32, i32
  }
  func.func @transform_3(%arg0: i32) -> (i32, i32) {
    %c0_i32 = arith.constant 0 : i32
    %c0_i32_0 = arith.constant 0 : i32
    %c0_i32_1 = arith.constant 0 : i32
    return %c0_i32, %c0_i32_0 : i32, i32
  }
  func.func @transform_4(%arg0: i32) -> (i32, i32) {
    %c0_i32 = arith.constant 0 : i32
    %c0_i32_0 = arith.constant 0 : i32
    %c0_i32_1 = arith.constant 0 : i32
    return %c0_i32, %c0_i32_0 : i32, i32
  }
  func.func @transform_5(%arg0: i32) -> (i32, i32) {
    %c0_i32 = arith.constant 0 : i32
    %c0_i32_0 = arith.constant 0 : i32
    %c0_i32_1 = arith.constant 0 : i32
    return %c0_i32, %c0_i32_0 : i32, i32
  }
  func.func @transform_6(%arg0: i32) -> (i32, i32) {
    %c0_i32 = arith.constant 0 : i32
    %c0_i32_0 = arith.constant 0 : i32
    %c0_i32_1 = arith.constant 0 : i32
    return %c0_i32, %c0_i32_0 : i32, i32
  }
  func.func @transform_7(%arg0: i32) -> (i32, i32) {
    %c0_i32 = arith.constant 0 : i32
    %c0_i32_0 = arith.constant 0 : i32
    %c0_i32_1 = arith.constant 0 : i32
    return %c0_i32, %c0_i32_0 : i32, i32
  }
  func.func @transform_8(%arg0: i32) -> (i32, i32) {
    %c0_i32 = arith.constant 0 : i32
    %c0_i32_0 = arith.constant 0 : i32
    %c0_i32_1 = arith.constant 0 : i32
    return %c0_i32, %c0_i32_0 : i32, i32
  }
  func.func @transform_9(%arg0: i32) -> (i32, i32) {
    %c0_i32 = arith.constant 0 : i32
    %c0_i32_0 = arith.constant 0 : i32
    return %arg0, %c0_i32 : i32, i32
  }
}

</mosaic_0001>

<llo_original>
// kernel: tpu_custom_call.1
$region0: #{tpu_custom_call.1}
  #allocation0 [shape = 'u32[]', space=smem, size = 0x4, offset = 0x4, fixed_abs, tag = 'smem constant byte address 0x4 - core index']
  #allocation1 [shape = 'u32[144,128]{1,0:T(1,128)}', space=vmem, size = 0x12000, scoped, tag = 'internal scratch']
  %s0 = inlined_call_operand.hbm [shape: f32[8,784], index: 0, kind: input, shape index: {}]
  %s1 = inlined_call_operand.hbm [shape: bf16[784,256], index: 1, kind: input, shape index: {}]
  %s2 = inlined_call_operand.vmem [shape: f32[1,256], index: 2, kind: input, shape index: {}]
  %s3 = inlined_call_operand.hbm [shape: bf16[256,128], index: 3, kind: input, shape index: {}]
  %s4 = inlined_call_operand.vmem [shape: f32[1,128], index: 4, kind: input, shape index: {}]
  %s5 = inlined_call_operand.vmem [shape: bf16[128,128], index: 5, kind: input, shape index: {}]
  %s6 = inlined_call_operand.vmem [shape: f32[1,128], index: 6, kind: input, shape index: {}]
  %s7 = inlined_call_operand.vmem [shape: bf16[128,10], index: 7, kind: input, shape index: {}]
  %s8 = inlined_call_operand.vmem [shape: f32[1,10], index: 8, kind: input, shape index: {}]
  %s9 = inlined_call_operand.hbm [shape: f32[8,10], index: 9, kind: output, shape index: {}]
  %s10 = sld [smem:[#allocation0]]
  $region58: #{tpu_custom_call.1} parent=0
    _
  %s12 = ssub.s32 1, %s10
  %s13 = scalar_select 0, %s12, %s10
  $region1: #{tpu_custom_call.1} parent=0
    #allocation2 [shape = 'u8[28672]{0}', space=vmem, size = 0x7000, scoped, tag = 'input window, operand 0, single buffered']
    #allocation3 [shape = 's32[1]{0}', space=sflag, size = 0x4, scoped, tag = 'scoped memory for tpu_custom_call.1']
    #allocation4 [shape = 's32[1]{0}', space=sflag, size = 0x4, scoped, tag = 'scoped memory for tpu_custom_call.1']
    #allocation5 [shape = 'u8[401408]{0}', space=vmem, size = 0x62000, scoped, tag = 'input window, operand 1, single buffered']
    #allocation6 [shape = 's32[1]{0}', space=sflag, size = 0x4, scoped, tag = 'scoped memory for tpu_custom_call.1']
    #allocation7 [shape = 'u8[65536]{0}', space=vmem, size = 0x10000, scoped, tag = 'input window, operand 3, single buffered']
    #allocation8 [shape = 'u8[4096]{0}', space=vmem, size = 0x1000, scoped, tag = 'output window, operand 0, single buffered']
    %14 = vsyncpa [#allocation3], 0
    %15 = vsyncpa [#allocation6], 0
    %16 = vsyncpa [#allocation4], 0
    // Predicated region
    $region2: #{tpu_custom_call.1} parent=1 // pred_check
      _
    $region3: #{tpu_custom_call.1} parent=1 // pred_check_branch
      %18 = sbr.rel (0) target = $region5
    $region4: #{tpu_custom_call.1} parent=1 // pred_region
      %s20 = ssub.s32 896, 896
      %21 = vsyncadd [#allocation3], %s20
      %s23 = sshll.u32 [#allocation2], 4
      %s24 = int_to_ptr.vmem [resolvable:$true] %s23
      %26 = dma.hbm_to_vmem [thread:$0]  %s0, 896, %s24, [#allocation3]
    $region5: #{tpu_custom_call.1} parent=1 // pred_fallthru
      _
    // Predicated region
    $region6: #{tpu_custom_call.1} parent=1 // pred_check
      _
    $region7: #{tpu_custom_call.1} parent=1 // pred_check_branch
      %28 = sbr.rel (0) target = $region9
    $region8: #{tpu_custom_call.1} parent=1 // pred_region
      %s30 = ssub.s32 12544, 12544
      %31 = vsyncadd [#allocation6], %s30
      %s32 = sshll.u32 [#allocation5], 4
      %s33 = int_to_ptr.vmem [resolvable:$true] %s32
      %38 = dma.hbm_to_vmem [thread:$0]  %s1, 12544, %s33, [#allocation6], 128, 128, 8
    $region9: #{tpu_custom_call.1} parent=1 // pred_fallthru
      _
    // Predicated region
    $region10: #{tpu_custom_call.1} parent=1 // pred_check
      _
    $region11: #{tpu_custom_call.1} parent=1 // pred_check_branch
      %40 = sbr.rel (0) target = $region13
    $region12: #{tpu_custom_call.1} parent=1 // pred_region
      _
    $region13: #{tpu_custom_call.1} parent=1 // pred_fallthru
      _
    // Predicated region
    $region14: #{tpu_custom_call.1} parent=1 // pred_check
      _
    $region15: #{tpu_custom_call.1} parent=1 // pred_check_branch
      %42 = sbr.rel (0) target = $region17
    $region16: #{tpu_custom_call.1} parent=1 // pred_region
      %s44 = ssub.s32 2048, 2048
      %45 = vsyncadd [#allocation6], %s44
      %s46 = sshll.u32 [#allocation7], 4
      %s47 = int_to_ptr.vmem [resolvable:$true] %s46
      %52 = dma.hbm_to_vmem [thread:$0]  %s3, 2048, %s47, [#allocation6], 64, 64, 4
    $region17: #{tpu_custom_call.1} parent=1 // pred_fallthru
      _
    // Predicated region
    $region18: #{tpu_custom_call.1} parent=1 // pred_check
      _
    $region19: #{tpu_custom_call.1} parent=1 // pred_check_branch
      %54 = sbr.rel (0) target = $region21
    $region20: #{tpu_custom_call.1} parent=1 // pred_region
      _
    $region21: #{tpu_custom_call.1} parent=1 // pred_fallthru
      _
    // Predicated region
    $region22: #{tpu_custom_call.1} parent=1 // pred_check
      _
    $region23: #{tpu_custom_call.1} parent=1 // pred_check_branch
      %56 = sbr.rel (0) target = $region25
    $region24: #{tpu_custom_call.1} parent=1 // pred_region
      _
    $region25: #{tpu_custom_call.1} parent=1 // pred_fallthru
      _
    // Predicated region
    $region26: #{tpu_custom_call.1} parent=1 // pred_check
      _
    $region27: #{tpu_custom_call.1} parent=1 // pred_check_branch
      %58 = sbr.rel (0) target = $region29
    $region28: #{tpu_custom_call.1} parent=1 // pred_region
      _
    $region29: #{tpu_custom_call.1} parent=1 // pred_fallthru
      _
    // Predicated region
    $region30: #{tpu_custom_call.1} parent=1 // pred_check
      _
    $region31: #{tpu_custom_call.1} parent=1 // pred_check_branch
      %60 = sbr.rel (0) target = $region33
    $region32: #{tpu_custom_call.1} parent=1 // pred_region
      _
    $region33: #{tpu_custom_call.1} parent=1 // pred_fallthru
      _
    // Predicated region
    $region34: #{tpu_custom_call.1} parent=1 // pred_check
      _
    $region35: #{tpu_custom_call.1} parent=1 // pred_check_branch
      %62 = sbr.rel (0) target = $region37
    $region36: #{tpu_custom_call.1} parent=1 // pred_region
      _
    $region37: #{tpu_custom_call.1} parent=1 // pred_fallthru
      _
    // Predicated region
    $region38: #{tpu_custom_call.1} parent=1 // pred_check
      _
    $region39: #{tpu_custom_call.1} parent=1 // pred_check_branch
      %64 = sbr.rel (0) target = $region41
    $region40: #{tpu_custom_call.1} parent=1 // pred_region
      %65 = dma.done [#allocation3], 896
    $region41: #{tpu_custom_call.1} parent=1 // pred_fallthru
      _
    // Predicated region
    $region42: #{tpu_custom_call.1} parent=1 // pred_check
      _
    $region43: #{tpu_custom_call.1} parent=1 // pred_check_branch
      %67 = sbr.rel (0) target = $region45
    $region44: #{tpu_custom_call.1} parent=1 // pred_region
      %68 = dma.done [#allocation6], 12544
    $region45: #{tpu_custom_call.1} parent=1 // pred_fallthru
      _
    // Predicated region
    $region46: #{tpu_custom_call.1} parent=1 // pred_check
      _
    $region47: #{tpu_custom_call.1} parent=1 // pred_check_branch
      %70 = sbr.rel (0) target = $region49
    $region48: #{tpu_custom_call.1} parent=1 // pred_region
      %71 = dma.done [#allocation6], 2048
    $region49: #{tpu_custom_call.1} parent=1 // pred_fallthru
      _
    %v73 = vld [vmem:[#allocation2] sm:$0xff]
    %v74 = vld [vmem:[#allocation2 + $0x8] sm:$0xff]
    %v75 = vld [vmem:[#allocation2 + $0x10] sm:$0xff]
    %v76 = vld [vmem:[#allocation2 + $0x18] sm:$0xff]
    %v77 = vld [vmem:[#allocation2 + $0x20] sm:$0xff]
    %v78 = vld [vmem:[#allocation2 + $0x28] sm:$0xff]
    %v79 = vld [vmem:[#allocation2 + $0x30] sm:$0xff]
    %v80 = vpack.c.bf16 %v73, %v73
    %v81 = vpack.c.bf16 %v74, %v74
    %v82 = vpack.c.bf16 %v75, %v75
    %v83 = vpack.c.bf16 %v76, %v76
    %v84 = vpack.c.bf16 %v77, %v77
    %v85 = vpack.c.bf16 %v78, %v78
    %v86 = vpack.c.bf16 %v79, %v79
    %v87 = vld [vmem:[#allocation5] sm:$0xff]
    %v88 = vld [vmem:[#allocation5 + $0x8] sm:$0xff]
    %v89 = vld [vmem:[#allocation5 + $0x10] sm:$0xff]
    %v90 = vld [vmem:[#allocation5 + $0x18] sm:$0xff]
    %v91 = vld [vmem:[#allocation5 + $0x20] sm:$0xff]
    %v92 = vld [vmem:[#allocation5 + $0x28] sm:$0xff]
    %v93 = vld [vmem:[#allocation5 + $0x30] sm:$0xff]
    %v94 = vld [vmem:[#allocation5 + $0x38] sm:$0xff]
    %v95 = vld [vmem:[#allocation5 + $0x40] sm:$0xff]
    %v96 = vld [vmem:[#allocation5 + $0x48] sm:$0xff]
    %v97 = vld [vmem:[#allocation5 + $0x50] sm:$0xff]
    %v98 = vld [vmem:[#allocation5 + $0x58] sm:$0xff]
    %v99 = vld [vmem:[#allocation5 + $0x60] sm:$0xff]
    %v100 = vld [vmem:[#allocation5 + $0x68] sm:$0xff]
    %v101 = vld [vmem:[#allocation5 + $0x70] sm:$0xff]
    %v102 = vld [vmem:[#allocation5 + $0x78] sm:$0xff]
    %v103 = vld [vmem:[#allocation5 + $0x80] sm:$0xff]
    %v104 = vld [vmem:[#allocation5 + $0x88] sm:$0xff]
    %v105 = vld [vmem:[#allocation5 + $0x90] sm:$0xff]
    %v106 = vld [vmem:[#allocation5 + $0x98] sm:$0xff]
    %v107 = vld [vmem:[#allocation5 + $0xa0] sm:$0xff]
    %v108 = vld [vmem:[#allocation5 + $0xa8] sm:$0xff]
    %v109 = vld [vmem:[#allocation5 + $0xb0] sm:$0xff]
    %v110 = vld [vmem:[#allocation5 + $0xb8] sm:$0xff]
    %v111 = vld [vmem:[#allocation5 + $0xc0] sm:$0xff]
    %v112 = vld [vmem:[#allocation5 + $0xc8] sm:$0xff]
    %v113 = vld [vmem:[#allocation5 + $0xd0] sm:$0xff]
    %v114 = vld [vmem:[#allocation5 + $0xd8] sm:$0xff]
    %v115 = vld [vmem:[#allocation5 + $0xe0] sm:$0xff]
    %v116 = vld [vmem:[#allocation5 + $0xe8] sm:$0xff]
    %v117 = vld [vmem:[#allocation5 + $0xf0] sm:$0xff]
    %v118 = vld [vmem:[#allocation5 + $0xf8] sm:$0xff]
    %v119 = vld [vmem:[#allocation5 + $0x100] sm:$0xff]
    %v120 = vld [vmem:[#allocation5 + $0x108] sm:$0xff]
    %v121 = vld [vmem:[#allocation5 + $0x110] sm:$0xff]
    %v122 = vld [vmem:[#allocation5 + $0x118] sm:$0xff]
    %v123 = vld [vmem:[#allocation5 + $0x120] sm:$0xff]
    %v124 = vld [vmem:[#allocation5 + $0x128] sm:$0xff]
    %v125 = vld [vmem:[#allocation5 + $0x130] sm:$0xff]
    %v126 = vld [vmem:[#allocation5 + $0x138] sm:$0xff]
    %v127 = vld [vmem:[#allocation5 + $0x140] sm:$0xff]
    %v128 = vld [vmem:[#allocation5 + $0x148] sm:$0xff]
    %v129 = vld [vmem:[#allocation5 + $0x150] sm:$0xff]
    %v130 = vld [vmem:[#allocation5 + $0x158] sm:$0xff]
    %v131 = vld [vmem:[#allocation5 + $0x160] sm:$0xff]
    %v132 = vld [vmem:[#allocation5 + $0x168] sm:$0xff]
    %v133 = vld [vmem:[#allocation5 + $0x170] sm:$0xff]
    %v134 = vld [vmem:[#allocation5 + $0x178] sm:$0xff]
    %v135 = vld [vmem:[#allocation5 + $0x180] sm:$0xff]
    %v136 = vld [vmem:[#allocation5 + $0x188] sm:$0xff]
    %v137 = vld [vmem:[#allocation5 + $0x190] sm:$0xff]
    %v138 = vld [vmem:[#allocation5 + $0x198] sm:$0xff]
    %v139 = vld [vmem:[#allocation5 + $0x1a0] sm:$0xff]
    %v140 = vld [vmem:[#allocation5 + $0x1a8] sm:$0xff]
    %v141 = vld [vmem:[#allocation5 + $0x1b0] sm:$0xff]
    %v142 = vld [vmem:[#allocation5 + $0x1b8] sm:$0xff]
    %v143 = vld [vmem:[#allocation5 + $0x1c0] sm:$0xff]
    %v144 = vld [vmem:[#allocation5 + $0x1c8] sm:$0xff]
    %v145 = vld [vmem:[#allocation5 + $0x1d0] sm:$0xff]
    %v146 = vld [vmem:[#allocation5 + $0x1d8] sm:$0xff]
    %v147 = vld [vmem:[#allocation5 + $0x1e0] sm:$0xff]
    %v148 = vld [vmem:[#allocation5 + $0x1e8] sm:$0xff]
    %v149 = vld [vmem:[#allocation5 + $0x1f0] sm:$0xff]
    %v150 = vld [vmem:[#allocation5 + $0x1f8] sm:$0xff]
    %v151 = vld [vmem:[#allocation5 + $0x200] sm:$0xff]
    %v152 = vld [vmem:[#allocation5 + $0x208] sm:$0xff]
    %v153 = vld [vmem:[#allocation5 + $0x210] sm:$0xff]
    %v154 = vld [vmem:[#allocation5 + $0x218] sm:$0xff]
    %v155 = vld [vmem:[#allocation5 + $0x220] sm:$0xff]
    %v156 = vld [vmem:[#allocation5 + $0x228] sm:$0xff]
    %v157 = vld [vmem:[#allocation5 + $0x230] sm:$0xff]
    %v158 = vld [vmem:[#allocation5 + $0x238] sm:$0xff]
    %v159 = vld [vmem:[#allocation5 + $0x240] sm:$0xff]
    %v160 = vld [vmem:[#allocation5 + $0x248] sm:$0xff]
    %v161 = vld [vmem:[#allocation5 + $0x250] sm:$0xff]
    %v162 = vld [vmem:[#allocation5 + $0x258] sm:$0xff]
    %v163 = vld [vmem:[#allocation5 + $0x260] sm:$0xff]
    %v164 = vld [vmem:[#allocation5 + $0x268] sm:$0xff]
    %v165 = vld [vmem:[#allocation5 + $0x270] sm:$0xff]
    %v166 = vld [vmem:[#allocation5 + $0x278] sm:$0xff]
    %v167 = vld [vmem:[#allocation5 + $0x280] sm:$0xff]
    %v168 = vld [vmem:[#allocation5 + $0x288] sm:$0xff]
    %v169 = vld [vmem:[#allocation5 + $0x290] sm:$0xff]
    %v170 = vld [vmem:[#allocation5 + $0x298] sm:$0xff]
    %v171 = vld [vmem:[#allocation5 + $0x2a0] sm:$0xff]
    %v172 = vld [vmem:[#allocation5 + $0x2a8] sm:$0xff]
    %v173 = vld [vmem:[#allocation5 + $0x2b0] sm:$0xff]
    %v174 = vld [vmem:[#allocation5 + $0x2b8] sm:$0xff]
    %v175 = vld [vmem:[#allocation5 + $0x2c0] sm:$0xff]
    %v176 = vld [vmem:[#allocation5 + $0x2c8] sm:$0xff]
    %v177 = vld [vmem:[#allocation5 + $0x2d0] sm:$0xff]
    %v178 = vld [vmem:[#allocation5 + $0x2d8] sm:$0xff]
    %v179 = vld [vmem:[#allocation5 + $0x2e0] sm:$0xff]
    %v180 = vld [vmem:[#allocation5 + $0x2e8] sm:$0xff]
    %v181 = vld [vmem:[#allocation5 + $0x2f0] sm:$0xff]
    %v182 = vld [vmem:[#allocation5 + $0x2f8] sm:$0xff]
    %v183 = vld [vmem:[#allocation5 + $0x300] sm:$0xff]
    %v184 = vld [vmem:[#allocation5 + $0x308] sm:$0xff]
    %v185 = vld [vmem:[%s2] sm:$0x3]
    %v187 = vlaneseq
    %v188 = vshrl.u32 %v187, 7
    %v189 = vsub.s32 0, %v188
    %v190 = vrot.slane %v185, %v189
    %v191 = vlaneseq
    %v192 = vshrl.u32 %v191, 7
    %v193 = vsub.s32 1, %v192
    %v194 = vrot.slane %v185, %v193
    %v295 = vunpack.c.l.b16 %v87
    %v296 = vunpack.c.h.b16 %v87
    %v297 = vunpack.c.l.b16 %v88
    %v298 = vunpack.c.h.b16 %v88
    %v299 = vunpack.c.l.b16 %v89
    %v300 = vunpack.c.h.b16 %v89
    %v301 = vunpack.c.l.b16 %v90
    %v302 = vunpack.c.h.b16 %v90
    %v303 = vunpack.c.l.b16 %v91
    %v304 = vunpack.c.h.b16 %v91
    %v305 = vunpack.c.l.b16 %v92
    %v306 = vunpack.c.h.b16 %v92
    %v307 = vunpack.c.l.b16 %v93
    %v308 = vunpack.c.h.b16 %v93
    %v309 = vunpack.c.l.b16 %v94
    %v310 = vunpack.c.h.b16 %v94
    %v311 = vunpack.c.l.b16 %v95
    %v312 = vunpack.c.h.b16 %v95
    %v313 = vunpack.c.l.b16 %v96
    %v314 = vunpack.c.h.b16 %v96
    %v315 = vunpack.c.l.b16 %v97
    %v316 = vunpack.c.h.b16 %v97
    %v317 = vunpack.c.l.b16 %v98
    %v318 = vunpack.c.h.b16 %v98
    %v319 = vunpack.c.l.b16 %v99
    %v320 = vunpack.c.h.b16 %v99
    %v321 = vunpack.c.l.b16 %v100
    %v322 = vunpack.c.h.b16 %v100
    %v323 = vunpack.c.l.b16 %v101
    %v324 = vunpack.c.h.b16 %v101
    %v325 = vunpack.c.l.b16 %v102
    %v326 = vunpack.c.h.b16 %v102
    %v327 = vunpack.c.l.b16 %v103
    %v328 = vunpack.c.h.b16 %v103
    %v329 = vunpack.c.l.b16 %v104
    %v330 = vunpack.c.h.b16 %v104
    %v331 = vunpack.c.l.b16 %v105
    %v332 = vunpack.c.h.b16 %v105
    %v333 = vunpack.c.l.b16 %v106
    %v334 = vunpack.c.h.b16 %v106
    %v335 = vunpack.c.l.b16 %v107
    %v336 = vunpack.c.h.b16 %v107
    %v337 = vunpack.c.l.b16 %v108
    %v338 = vunpack.c.h.b16 %v108
    %v339 = vunpack.c.l.b16 %v109
    %v340 = vunpack.c.h.b16 %v109
    %v341 = vunpack.c.l.b16 %v110
    %v342 = vunpack.c.h.b16 %v110
    %v343 = vunpack.c.l.b16 %v111
    %v344 = vunpack.c.h.b16 %v111
    %v345 = vunpack.c.l.b16 %v112
    %v346 = vunpack.c.h.b16 %v112
    %v347 = vunpack.c.l.b16 %v113
    %v348 = vunpack.c.h.b16 %v113
    %v349 = vunpack.c.l.b16 %v114
    %v350 = vunpack.c.h.b16 %v114
    %v351 = vunpack.c.l.b16 %v115
    %v352 = vunpack.c.h.b16 %v115
    %v353 = vunpack.c.l.b16 %v116
    %v354 = vunpack.c.h.b16 %v116
    %v355 = vunpack.c.l.b16 %v117
    %v356 = vunpack.c.h.b16 %v117
    %v357 = vunpack.c.l.b16 %v118
    %v358 = vunpack.c.h.b16 %v118
    %v359 = vunpack.c.l.b16 %v119
    %v360 = vunpack.c.h.b16 %v119
    %v361 = vunpack.c.l.b16 %v120
    %v362 = vunpack.c.h.b16 %v120
    %v363 = vunpack.c.l.b16 %v121
    %v364 = vunpack.c.h.b16 %v121
    %v365 = vunpack.c.l.b16 %v122
    %v366 = vunpack.c.h.b16 %v122
    %v367 = vunpack.c.l.b16 %v123
    %v368 = vunpack.c.h.b16 %v123
    %v369 = vunpack.c.l.b16 %v124
    %v370 = vunpack.c.h.b16 %v124
    %v371 = vunpack.c.l.b16 %v125
    %v372 = vunpack.c.h.b16 %v125
    %v373 = vunpack.c.l.b16 %v126
    %v374 = vunpack.c.h.b16 %v126
    %v375 = vunpack.c.l.b16 %v127
    %v376 = vunpack.c.h.b16 %v127
    %v377 = vunpack.c.l.b16 %v128
    %v378 = vunpack.c.h.b16 %v128
    %v379 = vunpack.c.l.b16 %v129
    %v380 = vunpack.c.h.b16 %v129
    %v381 = vunpack.c.l.b16 %v130
    %v382 = vunpack.c.h.b16 %v130
    %v383 = vunpack.c.l.b16 %v131
    %v384 = vunpack.c.h.b16 %v131
    %v385 = vunpack.c.l.b16 %v132
    %v386 = vunpack.c.h.b16 %v132
    %v387 = vunpack.c.l.b16 %v133
    %v388 = vunpack.c.h.b16 %v133
    %v389 = vunpack.c.l.b16 %v134
    %v390 = vunpack.c.h.b16 %v134
    %v391 = vunpack.c.l.b16 %v135
    %v392 = vunpack.c.h.b16 %v135
    %v393 = vunpack.c.l.b16 %v136
    %v394 = vunpack.c.h.b16 %v136
    %v395 = vunpack.c.l.b16 %v137
    %v396 = vunpack.c.h.b16 %v137
    %v397 = vunpack.c.l.b16 %v138
    %v398 = vunpack.c.h.b16 %v138
    %v399 = vunpack.c.l.b16 %v139
    %v400 = vunpack.c.h.b16 %v139
    %v401 = vunpack.c.l.b16 %v140
    %v402 = vunpack.c.h.b16 %v140
    %v403 = vunpack.c.l.b16 %v141
    %v404 = vunpack.c.h.b16 %v141
    %v405 = vunpack.c.l.b16 %v142
    %v406 = vunpack.c.h.b16 %v142
    %v407 = vunpack.c.l.b16 %v143
    %v408 = vunpack.c.h.b16 %v143
    %v409 = vunpack.c.l.b16 %v144
    %v410 = vunpack.c.h.b16 %v144
    %v411 = vunpack.c.l.b16 %v145
    %v412 = vunpack.c.h.b16 %v145
    %v413 = vunpack.c.l.b16 %v146
    %v414 = vunpack.c.h.b16 %v146
    %v415 = vunpack.c.l.b16 %v147
    %v416 = vunpack.c.h.b16 %v147
    %v417 = vunpack.c.l.b16 %v148
    %v418 = vunpack.c.h.b16 %v148
    %v419 = vunpack.c.l.b16 %v149
    %v420 = vunpack.c.h.b16 %v149
    %v421 = vunpack.c.l.b16 %v150
    %v422 = vunpack.c.h.b16 %v150
    %v423 = vunpack.c.l.b16 %v151
    %v424 = vunpack.c.h.b16 %v151
    %v425 = vunpack.c.l.b16 %v152
    %v426 = vunpack.c.h.b16 %v152
    %v427 = vunpack.c.l.b16 %v153
    %v428 = vunpack.c.h.b16 %v153
    %v429 = vunpack.c.l.b16 %v154
    %v430 = vunpack.c.h.b16 %v154
    %v431 = vunpack.c.l.b16 %v155
    %v432 = vunpack.c.h.b16 %v155
    %v433 = vunpack.c.l.b16 %v156
    %v434 = vunpack.c.h.b16 %v156
    %v435 = vunpack.c.l.b16 %v157
    %v436 = vunpack.c.h.b16 %v157
    %v437 = vunpack.c.l.b16 %v158
    %v438 = vunpack.c.h.b16 %v158
    %v439 = vunpack.c.l.b16 %v159
    %v440 = vunpack.c.h.b16 %v159
    %v441 = vunpack.c.l.b16 %v160
    %v442 = vunpack.c.h.b16 %v160
    %v443 = vunpack.c.l.b16 %v161
    %v444 = vunpack.c.h.b16 %v161
    %v445 = vunpack.c.l.b16 %v162
    %v446 = vunpack.c.h.b16 %v162
    %v447 = vunpack.c.l.b16 %v163
    %v448 = vunpack.c.h.b16 %v163
    %v449 = vunpack.c.l.b16 %v164
    %v450 = vunpack.c.h.b16 %v164
    %v451 = vunpack.c.l.b16 %v165
    %v452 = vunpack.c.h.b16 %v165
    %v453 = vunpack.c.l.b16 %v166
    %v454 = vunpack.c.h.b16 %v166
    %v455 = vunpack.c.l.b16 %v167
    %v456 = vunpack.c.h.b16 %v167
    %v457 = vunpack.c.l.b16 %v168
    %v458 = vunpack.c.h.b16 %v168
    %v459 = vunpack.c.l.b16 %v169
    %v460 = vunpack.c.h.b16 %v169
    %v461 = vunpack.c.l.b16 %v170
    %v462 = vunpack.c.h.b16 %v170
    %v463 = vunpack.c.l.b16 %v171
    %v464 = vunpack.c.h.b16 %v171
    %v465 = vunpack.c.l.b16 %v172
    %v466 = vunpack.c.h.b16 %v172
    %v467 = vunpack.c.l.b16 %v173
    %v468 = vunpack.c.h.b16 %v173
    %v469 = vunpack.c.l.b16 %v174
    %v470 = vunpack.c.h.b16 %v174
    %v471 = vunpack.c.l.b16 %v175
    %v472 = vunpack.c.h.b16 %v175
    %v473 = vunpack.c.l.b16 %v176
    %v474 = vunpack.c.h.b16 %v176
    %v475 = vunpack.c.l.b16 %v177
    %v476 = vunpack.c.h.b16 %v177
    %v477 = vunpack.c.l.b16 %v178
    %v478 = vunpack.c.h.b16 %v178
    %v479 = vunpack.c.l.b16 %v179
    %v480 = vunpack.c.h.b16 %v179
    %v481 = vunpack.c.l.b16 %v180
    %v482 = vunpack.c.h.b16 %v180
    %v483 = vunpack.c.l.b16 %v181
    %v484 = vunpack.c.h.b16 %v181
    %v485 = vunpack.c.l.b16 %v182
    %v486 = vunpack.c.h.b16 %v182
    %v487 = vunpack.c.l.b16 %v183
    %v488 = vunpack.c.h.b16 %v183
    %v489 = vunpack.c.l.b16 %v184
    %v490 = vunpack.c.h.b16 %v184
    %v491 = vpack.c.b16 %v297, %v295
    %v492 = vpack.c.b16 %v298, %v296
    %v493 = vpack.c.b16 %v301, %v299
    %v494 = vpack.c.b16 %v302, %v300
    %v495 = vpack.c.b16 %v305, %v303
    %v496 = vpack.c.b16 %v306, %v304
    %v497 = vpack.c.b16 %v309, %v307
    %v498 = vpack.c.b16 %v310, %v308
    %v499 = vpack.c.b16 %v313, %v311
    %v500 = vpack.c.b16 %v314, %v312
    %v501 = vpack.c.b16 %v317, %v315
    %v502 = vpack.c.b16 %v318, %v316
    %v503 = vpack.c.b16 %v321, %v319
    %v504 = vpack.c.b16 %v322, %v320
    %v505 = vpack.c.b16 %v325, %v323
    %v506 = vpack.c.b16 %v326, %v324
    %v507 = vpack.c.b16 %v329, %v327
    %v508 = vpack.c.b16 %v330, %v328
    %v509 = vpack.c.b16 %v333, %v331
    %v510 = vpack.c.b16 %v334, %v332
    %v511 = vpack.c.b16 %v337, %v335
    %v512 = vpack.c.b16 %v338, %v336
    %v513 = vpack.c.b16 %v341, %v339
    %v514 = vpack.c.b16 %v342, %v340
    %v515 = vpack.c.b16 %v345, %v343
    %v516 = vpack.c.b16 %v346, %v344
    %v517 = vpack.c.b16 %v349, %v347
    %v518 = vpack.c.b16 %v350, %v348
    %v519 = vpack.c.b16 %v353, %v351
    %v520 = vpack.c.b16 %v354, %v352
    %v521 = vpack.c.b16 %v357, %v355
    %v522 = vpack.c.b16 %v358, %v356
    %v523 = vpack.c.b16 %v361, %v359
    %v524 = vpack.c.b16 %v362, %v360
    %v525 = vpack.c.b16 %v365, %v363
    %v526 = vpack.c.b16 %v366, %v364
    %v527 = vpack.c.b16 %v369, %v367
    %v528 = vpack.c.b16 %v370, %v368
    %v529 = vpack.c.b16 %v373, %v371
    %v530 = vpack.c.b16 %v374, %v372
    %v531 = vpack.c.b16 %v377, %v375
    %v532 = vpack.c.b16 %v378, %v376
    %v533 = vpack.c.b16 %v381, %v379
    %v534 = vpack.c.b16 %v382, %v380
    %v535 = vpack.c.b16 %v385, %v383
    %v536 = vpack.c.b16 %v386, %v384
    %v537 = vpack.c.b16 %v389, %v387
    %v538 = vpack.c.b16 %v390, %v388
    %v539 = vpack.c.b16 %v393, %v391
    %v540 = vpack.c.b16 %v394, %v392
    %v541 = vpack.c.b16 %v397, %v395
    %v542 = vpack.c.b16 %v398, %v396
    %v543 = vpack.c.b16 %v401, %v399
    %v544 = vpack.c.b16 %v402, %v400
    %v545 = vpack.c.b16 %v405, %v403
    %v546 = vpack.c.b16 %v406, %v404
    %v547 = vpack.c.b16 %v409, %v407
    %v548 = vpack.c.b16 %v410, %v408
    %v549 = vpack.c.b16 %v413, %v411
    %v550 = vpack.c.b16 %v414, %v412
    %v551 = vpack.c.b16 %v417, %v415
    %v552 = vpack.c.b16 %v418, %v416
    %v553 = vpack.c.b16 %v421, %v419
    %v554 = vpack.c.b16 %v422, %v420
    %v555 = vpack.c.b16 %v425, %v423
    %v556 = vpack.c.b16 %v426, %v424
    %v557 = vpack.c.b16 %v429, %v427
    %v558 = vpack.c.b16 %v430, %v428
    %v559 = vpack.c.b16 %v433, %v431
    %v560 = vpack.c.b16 %v434, %v432
    %v561 = vpack.c.b16 %v437, %v435
    %v562 = vpack.c.b16 %v438, %v436
    %v563 = vpack.c.b16 %v441, %v439
    %v564 = vpack.c.b16 %v442, %v440
    %v565 = vpack.c.b16 %v445, %v443
    %v566 = vpack.c.b16 %v446, %v444
    %v567 = vpack.c.b16 %v449, %v447
    %v568 = vpack.c.b16 %v450, %v448
    %v569 = vpack.c.b16 %v453, %v451
    %v570 = vpack.c.b16 %v454, %v452
    %v571 = vpack.c.b16 %v457, %v455
    %v572 = vpack.c.b16 %v458, %v456
    %v573 = vpack.c.b16 %v461, %v459
    %v574 = vpack.c.b16 %v462, %v460
    %v575 = vpack.c.b16 %v465, %v463
    %v576 = vpack.c.b16 %v466, %v464
    %v577 = vpack.c.b16 %v469, %v467
    %v578 = vpack.c.b16 %v470, %v468
    %v579 = vpack.c.b16 %v473, %v471
    %v580 = vpack.c.b16 %v474, %v472
    %v581 = vpack.c.b16 %v477, %v475
    %v582 = vpack.c.b16 %v478, %v476
    %v583 = vpack.c.b16 %v481, %v479
    %v584 = vpack.c.b16 %v482, %v480
    %v585 = vpack.c.b16 %v485, %v483
    %v586 = vpack.c.b16 %v486, %v484
    %v587 = vpack.c.b16 %v489, %v487
    %v588 = vpack.c.b16 %v490, %v488
    %vm687 = vcmask 130048
    %v689 = vsel %vm687, %v86, 0
    %691 = vmatprep.subr.bf16.mxu0 %v506
    %692 = vmatpush1.bf16.msra.mxu0 %v505
    %693 = vmatprep.subr.bf16.mxu0 %v504
    %694 = vmatpush1.bf16.msra.mxu0 %v503
    %695 = vmatprep.subr.bf16.mxu0 %v502
    %696 = vmatpush1.bf16.msra.mxu0 %v501
    %697 = vmatprep.subr.bf16.mxu0 %v500
    %698 = vmatpush1.bf16.msra.mxu0 %v499
    %699 = vmatprep.subr.bf16.mxu0 %v498
    %700 = vmatpush1.bf16.msra.mxu0 %v497
    %701 = vmatprep.subr.bf16.mxu0 %v496
    %702 = vmatpush1.bf16.msra.mxu0 %v495
    %703 = vmatprep.subr.bf16.mxu0 %v494
    %704 = vmatpush1.bf16.msra.mxu0 %v493
    %705 = vmatprep.subr.bf16.mxu0 %v492
    %706 = vmatpush1.bf16.msra.mxu0 %v491
    %707 = vmatprep.subr.bf16.mxu0 %v522
    %708 = vmatpush2.bf16.msra.mxu0 %v521
    %709 = vmatprep.subr.bf16.mxu0 %v520
    %710 = vmatpush2.bf16.msra.mxu0 %v519
    %711 = vmatprep.subr.bf16.mxu0 %v518
    %712 = vmatpush2.bf16.msra.mxu0 %v517
    %713 = vmatprep.subr.bf16.mxu0 %v516
    %714 = vmatpush2.bf16.msra.mxu0 %v515
    %715 = vmatprep.subr.bf16.mxu0 %v514
    %716 = vmatpush2.bf16.msra.mxu0 %v513
    %717 = vmatprep.subr.bf16.mxu0 %v512
    %718 = vmatpush2.bf16.msra.mxu0 %v511
    %719 = vmatprep.subr.bf16.mxu0 %v510
    %720 = vmatpush2.bf16.msra.mxu0 %v509
    %721 = vmatprep.subr.bf16.mxu0 %v508
    %722 = vmatpush2.bf16.msra.mxu0 %v507
    %723 = vmatprep.mubr.bf16.mxu0 %v81
    %724 = vmatmul.mubr.bf16.gmra.mxu0 %v80
    %v725 = vpop.f32.mrf.mxu0
    %v726 = vadd.f32 %v190, %v725
    %v727 = vpop.f32.mrf.mxu0
    %v728 = vadd.f32 %v194, %v727
    %v729 = vpop.f32.mrf.mxu0
    %v730 = vpop.f32.mrf.mxu0
    %731 = vdwg.mxu0
    %732 = vmatprep.subr.bf16.mxu0 %v538
    %733 = vmatpush1.bf16.msra.mxu0 %v537
    %734 = vmatprep.subr.bf16.mxu0 %v536
    %735 = vmatpush1.bf16.msra.mxu0 %v535
    %736 = vmatprep.subr.bf16.mxu0 %v534
    %737 = vmatpush1.bf16.msra.mxu0 %v533
    %738 = vmatprep.subr.bf16.mxu0 %v532
    %739 = vmatpush1.bf16.msra.mxu0 %v531
    %740 = vmatprep.subr.bf16.mxu0 %v530
    %741 = vmatpush1.bf16.msra.mxu0 %v529
    %742 = vmatprep.subr.bf16.mxu0 %v528
    %743 = vmatpush1.bf16.msra.mxu0 %v527
    %744 = vmatprep.subr.bf16.mxu0 %v526
    %745 = vmatpush1.bf16.msra.mxu0 %v525
    %746 = vmatprep.subr.bf16.mxu0 %v524
    %747 = vmatpush1.bf16.msra.mxu0 %v523
    %748 = vmatprep.subr.bf16.mxu0 %v554
    %749 = vmatpush2.bf16.msra.mxu0 %v553
    %750 = vmatprep.subr.bf16.mxu0 %v552
    %751 = vmatpush2.bf16.msra.mxu0 %v551
    %752 = vmatprep.subr.bf16.mxu0 %v550
    %753 = vmatpush2.bf16.msra.mxu0 %v549
    %754 = vmatprep.subr.bf16.mxu0 %v548
    %755 = vmatpush2.bf16.msra.mxu0 %v547
    %756 = vmatprep.subr.bf16.mxu0 %v546
    %757 = vmatpush2.bf16.msra.mxu0 %v545
    %758 = vmatprep.subr.bf16.mxu0 %v544
    %759 = vmatpush2.bf16.msra.mxu0 %v543
    %760 = vmatprep.subr.bf16.mxu0 %v542
    %761 = vmatpush2.bf16.msra.mxu0 %v541
    %762 = vmatprep.subr.bf16.mxu0 %v540
    %763 = vmatpush2.bf16.msra.mxu0 %v539
    %764 = vmatprep.mubr.bf16.mxu0 %v83
    %765 = vmatmul.mubr.bf16.gmra.mxu0 %v82
    %v766 = vpop.f32.mrf.mxu0
    %v767 = vadd.f32 %v726, %v766
    %v768 = vpop.f32.mrf.mxu0
    %v769 = vadd.f32 %v728, %v768
    %v770 = vpop.f32.mrf.mxu0
    %v771 = vpop.f32.mrf.mxu0
    %772 = vdwg.mxu0
    %773 = vmatprep.subr.bf16.mxu0 %v570
    %774 = vmatpush1.bf16.msra.mxu0 %v569
    %775 = vmatprep.subr.bf16.mxu0 %v568
    %776 = vmatpush1.bf16.msra.mxu0 %v567
    %777 = vmatprep.subr.bf16.mxu0 %v566
    %778 = vmatpush1.bf16.msra.mxu0 %v565
    %779 = vmatprep.subr.bf16.mxu0 %v564
    %780 = vmatpush1.bf16.msra.mxu0 %v563
    %781 = vmatprep.subr.bf16.mxu0 %v562
    %782 = vmatpush1.bf16.msra.mxu0 %v561
    %783 = vmatprep.subr.bf16.mxu0 %v560
    %784 = vmatpush1.bf16.msra.mxu0 %v559
    %785 = vmatprep.subr.bf16.mxu0 %v558
    %786 = vmatpush1.bf16.msra.mxu0 %v557
    %787 = vmatprep.subr.bf16.mxu0 %v556
    %788 = vmatpush1.bf16.msra.mxu0 %v555
    %789 = vmatprep.subr.bf16.mxu0 %v586
    %790 = vmatpush2.bf16.msra.mxu0 %v585
    %791 = vmatprep.subr.bf16.mxu0 %v584
    %792 = vmatpush2.bf16.msra.mxu0 %v583
    %793 = vmatprep.subr.bf16.mxu0 %v582
    %794 = vmatpush2.bf16.msra.mxu0 %v581
    %795 = vmatprep.subr.bf16.mxu0 %v580
    %796 = vmatpush2.bf16.msra.mxu0 %v579
    %797 = vmatprep.subr.bf16.mxu0 %v578
    %798 = vmatpush2.bf16.msra.mxu0 %v577
    %799 = vmatprep.subr.bf16.mxu0 %v576
    %800 = vmatpush2.bf16.msra.mxu0 %v575
    %801 = vmatprep.subr.bf16.mxu0 %v574
    %802 = vmatpush2.bf16.msra.mxu0 %v573
    %803 = vmatprep.subr.bf16.mxu0 %v572
    %804 = vmatpush2.bf16.msra.mxu0 %v571
    %805 = vmatprep.mubr.bf16.mxu0 %v85
    %806 = vmatmul.mubr.bf16.gmra.mxu0 %v84
    %v807 = vpop.f32.mrf.mxu0
    %v808 = vadd.f32 %v767, %v807
    %v809 = vpop.f32.mrf.mxu0
    %v810 = vadd.f32 %v769, %v809
    %v811 = vpop.f32.mrf.mxu0
    %v812 = vpop.f32.mrf.mxu0
    %813 = vdwg.mxu0
    %814 = vmatprep.subr.bf16.mxu0 0
    %815 = vmatpush1.bf16.msra.mxu0 0
    %816 = vmatprep.subr.bf16.mxu0 0
    %817 = vmatpush1.bf16.msra.mxu0 0
    %818 = vmatprep.subr.bf16.mxu0 0
    %819 = vmatpush1.bf16.msra.mxu0 0
    %820 = vmatprep.subr.bf16.mxu0 0
    %821 = vmatpush1.bf16.msra.mxu0 0
    %822 = vmatprep.subr.bf16.mxu0 0
    %823 = vmatpush1.bf16.msra.mxu0 0
    %824 = vmatprep.subr.bf16.mxu0 0
    %825 = vmatpush1.bf16.msra.mxu0 0
    %826 = vmatprep.subr.bf16.mxu0 0
    %827 = vmatpush1.bf16.msra.mxu0 0
    %828 = vmatprep.subr.bf16.mxu0 %v588
    %829 = vmatpush1.bf16.msra.mxu0 %v587
    %830 = vmatprep.subr.bf16.mxu0 0
    %831 = vmatpush2.bf16.msra.mxu0 0
    %832 = vmatprep.subr.bf16.mxu0 0
    %833 = vmatpush2.bf16.msra.mxu0 0
    %834 = vmatprep.subr.bf16.mxu0 0
    %835 = vmatpush2.bf16.msra.mxu0 0
    %836 = vmatprep.subr.bf16.mxu0 0
    %837 = vmatpush2.bf16.msra.mxu0 0
    %838 = vmatprep.subr.bf16.mxu0 0
    %839 = vmatpush2.bf16.msra.mxu0 0
    %840 = vmatprep.subr.bf16.mxu0 0
    %841 = vmatpush2.bf16.msra.mxu0 0
    %842 = vmatprep.subr.bf16.mxu0 0
    %843 = vmatpush2.bf16.msra.mxu0 0
    %844 = vmatprep.subr.bf16.mxu0 0
    %845 = vmatpush2.bf16.msra.mxu0 0
    %846 = vmatprep.mubr.bf16.mxu0 0
    %847 = vmatmul.mubr.bf16.gmra.mxu0 %v689
    %v848 = vpop.f32.mrf.mxu0
    %v849 = vadd.f32 %v808, %v848
    %v850 = vpop.f32.mrf.mxu0
    %v851 = vadd.f32 %v810, %v850
    %v852 = vpop.f32.mrf.mxu0
    %v853 = vpop.f32.mrf.mxu0
    %854 = vdwg.mxu0
    %v855 = vmax.f32 %v849, 0.0
    %v856 = vmax.f32 %v851, 0.0
    %v857 = vpack.c.bf16 %v855, %v855
    %v858 = vpack.c.bf16 %v856, %v856
    %v859 = vld [vmem:[#allocation7] sm:$0xf]
    %v860 = vld [vmem:[#allocation7 + $0x4] sm:$0xf]
    %v861 = vld [vmem:[#allocation7 + $0x8] sm:$0xf]
    %v862 = vld [vmem:[#allocation7 + $0xc] sm:$0xf]
    %v863 = vld [vmem:[#allocation7 + $0x10] sm:$0xf]
    %v864 = vld [vmem:[#allocation7 + $0x14] sm:$0xf]
    %v865 = vld [vmem:[#allocation7 + $0x18] sm:$0xf]
    %v866 = vld [vmem:[#allocation7 + $0x1c] sm:$0xf]
    %v867 = vld [vmem:[#allocation7 + $0x20] sm:$0xf]
    %v868 = vld [vmem:[#allocation7 + $0x24] sm:$0xf]
    %v869 = vld [vmem:[#allocation7 + $0x28] sm:$0xf]
    %v870 = vld [vmem:[#allocation7 + $0x2c] sm:$0xf]
    %v871 = vld [vmem:[#allocation7 + $0x30] sm:$0xf]
    %v872 = vld [vmem:[#allocation7 + $0x34] sm:$0xf]
    %v873 = vld [vmem:[#allocation7 + $0x38] sm:$0xf]
    %v874 = vld [vmem:[#allocation7 + $0x3c] sm:$0xf]
    %v875 = vld [vmem:[#allocation7 + $0x40] sm:$0xf]
    %v876 = vld [vmem:[#allocation7 + $0x44] sm:$0xf]
    %v877 = vld [vmem:[#allocation7 + $0x48] sm:$0xf]
    %v878 = vld [vmem:[#allocation7 + $0x4c] sm:$0xf]
    %v879 = vld [vmem:[#allocation7 + $0x50] sm:$0xf]
    %v880 = vld [vmem:[#allocation7 + $0x54] sm:$0xf]
    %v881 = vld [vmem:[#allocation7 + $0x58] sm:$0xf]
    %v882 = vld [vmem:[#allocation7 + $0x5c] sm:$0xf]
    %v883 = vld [vmem:[#allocation7 + $0x60] sm:$0xf]
    %v884 = vld [vmem:[#allocation7 + $0x64] sm:$0xf]
    %v885 = vld [vmem:[#allocation7 + $0x68] sm:$0xf]
    %v886 = vld [vmem:[#allocation7 + $0x6c] sm:$0xf]
    %v887 = vld [vmem:[#allocation7 + $0x70] sm:$0xf]
    %v888 = vld [vmem:[#allocation7 + $0x74] sm:$0xf]
    %v889 = vld [vmem:[#allocation7 + $0x78] sm:$0xf]
    %v890 = vld [vmem:[#allocation7 + $0x7c] sm:$0xf]
    %v891 = vld [vmem:[%s4] sm:$0x1]
    %v893 = vlaneseq
    %v894 = vshrl.u32 %v893, 7
    %v895 = vsub.s32 0, %v894
    %v896 = vrot.slane %v891, %v895
    %v930 = vunpack.c.l.b16 %v859
    %v931 = vunpack.c.l.b16 %v860
    %v932 = vunpack.c.l.b16 %v861
    %v933 = vunpack.c.l.b16 %v862
    %v934 = vunpack.c.l.b16 %v863
    %v935 = vunpack.c.l.b16 %v864
    %v936 = vunpack.c.l.b16 %v865
    %v937 = vunpack.c.l.b16 %v866
    %v938 = vunpack.c.l.b16 %v867
    %v939 = vunpack.c.l.b16 %v868
    %v940 = vunpack.c.l.b16 %v869
    %v941 = vunpack.c.l.b16 %v870
    %v942 = vunpack.c.l.b16 %v871
    %v943 = vunpack.c.l.b16 %v872
    %v944 = vunpack.c.l.b16 %v873
    %v945 = vunpack.c.l.b16 %v874
    %v946 = vunpack.c.l.b16 %v875
    %v947 = vunpack.c.l.b16 %v876
    %v948 = vunpack.c.l.b16 %v877
    %v949 = vunpack.c.l.b16 %v878
    %v950 = vunpack.c.l.b16 %v879
    %v951 = vunpack.c.l.b16 %v880
    %v952 = vunpack.c.l.b16 %v881
    %v953 = vunpack.c.l.b16 %v882
    %v954 = vunpack.c.l.b16 %v883
    %v955 = vunpack.c.l.b16 %v884
    %v956 = vunpack.c.l.b16 %v885
    %v957 = vunpack.c.l.b16 %v886
    %v958 = vunpack.c.l.b16 %v887
    %v959 = vunpack.c.l.b16 %v888
    %v960 = vunpack.c.l.b16 %v889
    %v961 = vunpack.c.l.b16 %v890
    %v962 = vpack.c.b16 %v931, %v930
    %v963 = vpack.c.b16 %v933, %v932
    %v964 = vpack.c.b16 %v935, %v934
    %v965 = vpack.c.b16 %v937, %v936
    %v966 = vpack.c.b16 %v939, %v938
    %v967 = vpack.c.b16 %v941, %v940
    %v968 = vpack.c.b16 %v943, %v942
    %v969 = vpack.c.b16 %v945, %v944
    %v970 = vpack.c.b16 %v947, %v946
    %v971 = vpack.c.b16 %v949, %v948
    %v972 = vpack.c.b16 %v951, %v950
    %v973 = vpack.c.b16 %v953, %v952
    %v974 = vpack.c.b16 %v955, %v954
    %v975 = vpack.c.b16 %v957, %v956
    %v976 = vpack.c.b16 %v959, %v958
    %v977 = vpack.c.b16 %v961, %v960
    %994 = vmatprep.subr.bf16.mxu0 0
    %995 = vmatpush1.bf16.msra.mxu0 %v969
    %996 = vmatprep.subr.bf16.mxu0 0
    %997 = vmatpush1.bf16.msra.mxu0 %v968
    %998 = vmatprep.subr.bf16.mxu0 0
    %999 = vmatpush1.bf16.msra.mxu0 %v967
    %1000 = vmatprep.subr.bf16.mxu0 0
    %1001 = vmatpush1.bf16.msra.mxu0 %v966
    %1002 = vmatprep.subr.bf16.mxu0 0
    %1003 = vmatpush1.bf16.msra.mxu0 %v965
    %1004 = vmatprep.subr.bf16.mxu0 0
    %1005 = vmatpush1.bf16.msra.mxu0 %v964
    %1006 = vmatprep.subr.bf16.mxu0 0
    %1007 = vmatpush1.bf16.msra.mxu0 %v963
    %1008 = vmatprep.subr.bf16.mxu0 0
    %1009 = vmatpush1.bf16.msra.mxu0 %v962
    %1010 = vmatprep.subr.bf16.mxu0 0
    %1011 = vmatpush2.bf16.msra.mxu0 %v977
    %1012 = vmatprep.subr.bf16.mxu0 0
    %1013 = vmatpush2.bf16.msra.mxu0 %v976
    %1014 = vmatprep.subr.bf16.mxu0 0
    %1015 = vmatpush2.bf16.msra.mxu0 %v975
    %1016 = vmatprep.subr.bf16.mxu0 0
    %1017 = vmatpush2.bf16.msra.mxu0 %v974
    %1018 = vmatprep.subr.bf16.mxu0 0
    %1019 = vmatpush2.bf16.msra.mxu0 %v973
    %1020 = vmatprep.subr.bf16.mxu0 0
    %1021 = vmatpush2.bf16.msra.mxu0 %v972
    %1022 = vmatprep.subr.bf16.mxu0 0
    %1023 = vmatpush2.bf16.msra.mxu0 %v971
    %1024 = vmatprep.subr.bf16.mxu0 0
    %1025 = vmatpush2.bf16.msra.mxu0 %v970
    %1026 = vmatprep.mubr.bf16.mxu0 %v858
    %1027 = vmatmul.mubr.bf16.gmra.mxu0 %v857
    %v1028 = vpop.f32.mrf.mxu0
    %v1029 = vadd.f32 %v896, %v1028
    %v1030 = vpop.f32.mrf.mxu0
    %v1031 = vpop.f32.mrf.mxu0
    %v1032 = vpop.f32.mrf.mxu0
    %1033 = vdwg.mxu0
    %v1034 = vmax.f32 %v1029, 0.0
    %v1035 = vpack.c.bf16 %v1034, %v1034
    %v1036 = vld [vmem:[%s5] sm:$0xf]
    %v1037 = vld [vmem:[%s5 + $0x4] sm:$0xf]
    %v1038 = vld [vmem:[%s5 + $0x8] sm:$0xf]
    %v1039 = vld [vmem:[%s5 + $0xc] sm:$0xf]
    %v1040 = vld [vmem:[%s5 + $0x10] sm:$0xf]
    %v1041 = vld [vmem:[%s5 + $0x14] sm:$0xf]
    %v1042 = vld [vmem:[%s5 + $0x18] sm:$0xf]
    %v1043 = vld [vmem:[%s5 + $0x1c] sm:$0xf]
    %v1044 = vld [vmem:[%s5 + $0x20] sm:$0xf]
    %v1045 = vld [vmem:[%s5 + $0x24] sm:$0xf]
    %v1046 = vld [vmem:[%s5 + $0x28] sm:$0xf]
    %v1047 = vld [vmem:[%s5 + $0x2c] sm:$0xf]
    %v1048 = vld [vmem:[%s5 + $0x30] sm:$0xf]
    %v1049 = vld [vmem:[%s5 + $0x34] sm:$0xf]
    %v1050 = vld [vmem:[%s5 + $0x38] sm:$0xf]
    %v1051 = vld [vmem:[%s5 + $0x3c] sm:$0xf]
    %v1052 = vld [vmem:[%s6] sm:$0x1]
    %v1054 = vlaneseq
    %v1055 = vshrl.u32 %v1054, 7
    %v1056 = vsub.s32 0, %v1055
    %v1057 = vrot.slane %v1052, %v1056
    %v1075 = vunpack.c.l.b16 %v1036
    %v1076 = vunpack.c.l.b16 %v1037
    %v1077 = vunpack.c.l.b16 %v1038
    %v1078 = vunpack.c.l.b16 %v1039
    %v1079 = vunpack.c.l.b16 %v1040
    %v1080 = vunpack.c.l.b16 %v1041
    %v1081 = vunpack.c.l.b16 %v1042
    %v1082 = vunpack.c.l.b16 %v1043
    %v1083 = vunpack.c.l.b16 %v1044
    %v1084 = vunpack.c.l.b16 %v1045
    %v1085 = vunpack.c.l.b16 %v1046
    %v1086 = vunpack.c.l.b16 %v1047
    %v1087 = vunpack.c.l.b16 %v1048
    %v1088 = vunpack.c.l.b16 %v1049
    %v1089 = vunpack.c.l.b16 %v1050
    %v1090 = vunpack.c.l.b16 %v1051
    %v1091 = vpack.c.b16 %v1076, %v1075
    %v1092 = vpack.c.b16 %v1078, %v1077
    %v1093 = vpack.c.b16 %v1080, %v1079
    %v1094 = vpack.c.b16 %v1082, %v1081
    %v1095 = vpack.c.b16 %v1084, %v1083
    %v1096 = vpack.c.b16 %v1086, %v1085
    %v1097 = vpack.c.b16 %v1088, %v1087
    %v1098 = vpack.c.b16 %v1090, %v1089
    %1107 = vmatprep.subr.bf16.mxu0 0
    %1108 = vmatpush1.bf16.msra.mxu0 %v1098
    %1109 = vmatprep.subr.bf16.mxu0 0
    %1110 = vmatpush1.bf16.msra.mxu0 %v1097
    %1111 = vmatprep.subr.bf16.mxu0 0
    %1112 = vmatpush1.bf16.msra.mxu0 %v1096
    %1113 = vmatprep.subr.bf16.mxu0 0
    %1114 = vmatpush1.bf16.msra.mxu0 %v1095
    %1115 = vmatprep.subr.bf16.mxu0 0
    %1116 = vmatpush1.bf16.msra.mxu0 %v1094
    %1117 = vmatprep.subr.bf16.mxu0 0
    %1118 = vmatpush1.bf16.msra.mxu0 %v1093
    %1119 = vmatprep.subr.bf16.mxu0 0
    %1120 = vmatpush1.bf16.msra.mxu0 %v1092
    %1121 = vmatprep.subr.bf16.mxu0 0
    %1122 = vmatpush1.bf16.msra.mxu0 %v1091
    %1123 = vmatprep.subr.bf16.mxu0 0
    %1124 = vmatpush2.bf16.msra.mxu0 0
    %1125 = vmatprep.subr.bf16.mxu0 0
    %1126 = vmatpush2.bf16.msra.mxu0 0
    %1127 = vmatprep.subr.bf16.mxu0 0
    %1128 = vmatpush2.bf16.msra.mxu0 0
    %1129 = vmatprep.subr.bf16.mxu0 0
    %1130 = vmatpush2.bf16.msra.mxu0 0
    %1131 = vmatprep.subr.bf16.mxu0 0
    %1132 = vmatpush2.bf16.msra.mxu0 0
    %1133 = vmatprep.subr.bf16.mxu0 0
    %1134 = vmatpush2.bf16.msra.mxu0 0
    %1135 = vmatprep.subr.bf16.mxu0 0
    %1136 = vmatpush2.bf16.msra.mxu0 0
    %1137 = vmatprep.subr.bf16.mxu0 0
    %1138 = vmatpush2.bf16.msra.mxu0 0
    %1139 = vmatprep.mubr.bf16.mxu0 0
    %1140 = vmatmul.mubr.bf16.gmra.mxu0 %v1035
    %v1141 = vpop.f32.mrf.mxu0
    %v1142 = vadd.f32 %v1057, %v1141
    %v1143 = vpop.f32.mrf.mxu0
    %v1144 = vpop.f32.mrf.mxu0
    %v1145 = vpop.f32.mrf.mxu0
    %1146 = vdwg.mxu0
    %v1147 = vmax.f32 %v1142, 0.0
    %v1148 = vpack.c.bf16 %v1147, %v1147
    %v1149 = vld [vmem:[%s7] sm:$0xf]
    %v1150 = vld [vmem:[%s7 + $0x4] sm:$0xf]
    %v1151 = vld [vmem:[%s7 + $0x8] sm:$0xf]
    %v1152 = vld [vmem:[%s7 + $0xc] sm:$0xf]
    %v1153 = vld [vmem:[%s7 + $0x10] sm:$0xf]
    %v1154 = vld [vmem:[%s7 + $0x14] sm:$0xf]
    %v1155 = vld [vmem:[%s7 + $0x18] sm:$0xf]
    %v1156 = vld [vmem:[%s7 + $0x1c] sm:$0xf]
    %v1157 = vld [vmem:[%s7 + $0x20] sm:$0xf]
    %v1158 = vld [vmem:[%s7 + $0x24] sm:$0xf]
    %v1159 = vld [vmem:[%s7 + $0x28] sm:$0xf]
    %v1160 = vld [vmem:[%s7 + $0x2c] sm:$0xf]
    %v1161 = vld [vmem:[%s7 + $0x30] sm:$0xf]
    %v1162 = vld [vmem:[%s7 + $0x34] sm:$0xf]
    %v1163 = vld [vmem:[%s7 + $0x38] sm:$0xf]
    %v1164 = vld [vmem:[%s7 + $0x3c] sm:$0xf]
    %v1165 = vld [vmem:[%s8] sm:$0x1]
    %v1167 = vlaneseq
    %v1168 = vshrl.u32 %v1167, 7
    %v1169 = vsub.s32 0, %v1168
    %v1170 = vrot.slane %v1165, %v1169
    %v1188 = vunpack.c.l.b16 %v1149
    %v1189 = vunpack.c.l.b16 %v1150
    %v1190 = vunpack.c.l.b16 %v1151
    %v1191 = vunpack.c.l.b16 %v1152
    %v1192 = vunpack.c.l.b16 %v1153
    %v1193 = vunpack.c.l.b16 %v1154
    %v1194 = vunpack.c.l.b16 %v1155
    %v1195 = vunpack.c.l.b16 %v1156
    %v1196 = vunpack.c.l.b16 %v1157
    %v1197 = vunpack.c.l.b16 %v1158
    %v1198 = vunpack.c.l.b16 %v1159
    %v1199 = vunpack.c.l.b16 %v1160
    %v1200 = vunpack.c.l.b16 %v1161
    %v1201 = vunpack.c.l.b16 %v1162
    %v1202 = vunpack.c.l.b16 %v1163
    %v1203 = vunpack.c.l.b16 %v1164
    %v1204 = vpack.c.b16 %v1189, %v1188
    %v1205 = vpack.c.b16 %v1191, %v1190
    %v1206 = vpack.c.b16 %v1193, %v1192
    %v1207 = vpack.c.b16 %v1195, %v1194
    %v1208 = vpack.c.b16 %v1197, %v1196
    %v1209 = vpack.c.b16 %v1199, %v1198
    %v1210 = vpack.c.b16 %v1201, %v1200
    %v1211 = vpack.c.b16 %v1203, %v1202
    %1220 = vmatprep.subr.bf16.mxu0 0
    %1221 = vmatpush1.bf16.msra.mxu0 %v1211
    %1222 = vmatprep.subr.bf16.mxu0 0
    %1223 = vmatpush1.bf16.msra.mxu0 %v1210
    %1224 = vmatprep.subr.bf16.mxu0 0
    %1225 = vmatpush1.bf16.msra.mxu0 %v1209
    %1226 = vmatprep.subr.bf16.mxu0 0
    %1227 = vmatpush1.bf16.msra.mxu0 %v1208
    %1228 = vmatprep.subr.bf16.mxu0 0
    %1229 = vmatpush1.bf16.msra.mxu0 %v1207
    %1230 = vmatprep.subr.bf16.mxu0 0
    %1231 = vmatpush1.bf16.msra.mxu0 %v1206
    %1232 = vmatprep.subr.bf16.mxu0 0
    %1233 = vmatpush1.bf16.msra.mxu0 %v1205
    %1234 = vmatprep.subr.bf16.mxu0 0
    %1235 = vmatpush1.bf16.msra.mxu0 %v1204
    %1236 = vmatprep.subr.bf16.mxu0 0
    %1237 = vmatpush2.bf16.msra.mxu0 0
    %1238 = vmatprep.subr.bf16.mxu0 0
    %1239 = vmatpush2.bf16.msra.mxu0 0
    %1240 = vmatprep.subr.bf16.mxu0 0
    %1241 = vmatpush2.bf16.msra.mxu0 0
    %1242 = vmatprep.subr.bf16.mxu0 0
    %1243 = vmatpush2.bf16.msra.mxu0 0
    %1244 = vmatprep.subr.bf16.mxu0 0
    %1245 = vmatpush2.bf16.msra.mxu0 0
    %1246 = vmatprep.subr.bf16.mxu0 0
    %1247 = vmatpush2.bf16.msra.mxu0 0
    %1248 = vmatprep.subr.bf16.mxu0 0
    %1249 = vmatpush2.bf16.msra.mxu0 0
    %1250 = vmatprep.subr.bf16.mxu0 0
    %1251 = vmatpush2.bf16.msra.mxu0 0
    %1252 = vmatprep.mubr.bf16.mxu0 0
    %1253 = vmatmul.mubr.bf16.gmra.mxu0 %v1148
    %v1254 = vpop.f32.mrf.mxu0
    %v1255 = vadd.f32 %v1170, %v1254
    %v1256 = vpop.f32.mrf.mxu0
    %v1257 = vpop.f32.mrf.mxu0
    %v1258 = vpop.f32.mrf.mxu0
    %1259 = vdwg.mxu0
    %vm1260 = vcmask 80896
    %v1261 = vsel %vm1260, %v1255, -inf
    %1262 = vmax.xlane.f32.xlu0 %v1261
    %v1263 = vpop.xlane.xlu0 %1262
    %v1264 = vsub.f32 %v1255, %v1263
    %v1265 = vmul.f32 %v1264, 1.442695
    %v1266 = vpow.pop %v1265
    %v1267 = vsel %vm1260, %v1266, 0.0
    %1268 = vadd.xlane.f32.xlu0 %v1267
    %v1269 = vpop.xlane.xlu0 %1268
    %v1270 = vlog2.pop %v1269
    %v1271 = vmul.f32 %v1270, 0.6931472
    %v1272 = vsub.f32 %v1264, %v1271
    %1273 = vst.msk [vmem:[#allocation8] sm:$0xff] %vm1260, %v1272
    // Predicated region
    $region50: #{tpu_custom_call.1} parent=1 // pred_check
      _
    $region51: #{tpu_custom_call.1} parent=1 // pred_check_branch
      %1275 = sbr.rel (0) target = $region53
    $region52: #{tpu_custom_call.1} parent=1 // pred_region
      %s1277 = ssub.s32 128, 128
      %1278 = vsyncadd [#allocation4], %s1277
      %s1280 = sshll.u32 [#allocation8], 4
      %s1281 = int_to_ptr.vmem [resolvable:$true] %s1280
      %1283 = dma.vmem_to_hbm [thread:$0]  %s1281, 128, %s9, [#allocation4]
    $region53: #{tpu_custom_call.1} parent=1 // pred_fallthru
      _
    // Predicated region
    $region54: #{tpu_custom_call.1} parent=1 // pred_check
      _
    $region55: #{tpu_custom_call.1} parent=1 // pred_check_branch
      %1285 = sbr.rel (0) target = $region57
    $region56: #{tpu_custom_call.1} parent=1 // pred_region
      %1286 = dma.done [#allocation4], 128
    $region57: #{tpu_custom_call.1} parent=1 // pred_fallthru
      _
    %1287 = vsyncpa [#allocation3], 1
    %1288 = vsyncpa [#allocation6], 1
    %1289 = vsyncpa [#allocation4], 1

</llo_original>
